<compile_context>
chip_gen: v5e
topology: v5e:2x2
jax: 0.10.0
libtpu: 0.0.40
codegen_flags: <defaults>
</compile_context>

<pallas_src>
import jax
import jax.numpy as jnp
from jax import lax
from jax.experimental import pallas as pl
from jax.experimental.pallas import tpu as pltpu


def rsa_kernel(slen_ref, tlen_ref, s_ref, t_ref, out_s_ref, out_t_ref):
    TB, L, H = s_ref.shape
    LS = t_ref.shape[1]
    f32 = jnp.float32

    slen = slen_ref[...]                     # (TB, 1, 1) int32
    tlen = tlen_ref[...]                     # (TB, 1, 1) int32
    s = s_ref[...]                           # (TB, L, H)  native dtype
    t = t_ref[...]                           # (TB, LS, H)

    # MXU operands: bf16 when the inputs are f32 (f32xf32 MXU is a multi-pass fallback);
    # products accumulate in f32 either way.
    if s.dtype == jnp.float32:
        s_mm = s.astype(jnp.bfloat16)
        t_mm = t.astype(jnp.bfloat16)
    else:
        s_mm, t_mm = s, t

    # Pairwise matching scores, transposed-RHS matmul form (contract the hidden/lane axis
    # of both operands, batch over dim 0) -- no cross-lane transpose of t.
    M = lax.dot_general(
        s_mm, t_mm,
        dimension_numbers=(((2,), (2,)), ((0,), (0,))),
        preferred_element_type=f32)                                        # (TB, L, LS)

    # Thin rank-1 validity masks.
    mask_src = lax.broadcasted_iota(jnp.int32, (TB, L, 1), 1) < slen       # (TB, L, 1)
    mask_tgt_row = lax.broadcasted_iota(jnp.int32, (TB, 1, LS), 2) < tlen  # (TB, 1, LS)
    mask_tgt_col = lax.broadcasted_iota(jnp.int32, (TB, LS, 1), 1) < tlen  # (TB, LS, 1)

    # A single jointly-masked score matrix serves BOTH softmaxes: fully-masked rows /
    # columns are excluded from the averages by the thin vectors below, and for valid
    # rows / columns the joint mask equals the per-softmax mask of the reference.
    neg = f32(-1e9)
    Mm = jnp.where(mask_src, M, neg)
    Mm = jnp.where(mask_tgt_row, Mm, neg)

    ea = jnp.exp(Mm - jnp.max(Mm, axis=1, keepdims=True))  # alpha numerators (softmax over source axis)
    eb = jnp.exp(Mm - jnp.max(Mm, axis=2, keepdims=True))  # beta  numerators (softmax over target axis)

    # Softmax denominators directly in (.,1) sublane layout via tiny ones-matvecs (MXU);
    # each denominator is >= 1 (the column/row max contributes exp(0)=1), so no guards.
    ones_l = jnp.ones((TB, L, 1), f32)
    ones_s = jnp.ones((TB, LS, 1), f32)
    denom_a = jnp.einsum("bls,blo->bso", ea, ones_l,
                         preferred_element_type=f32)       # (TB, LS, 1) = sum_l ea
    denom_b = jnp.einsum("bls,bso->blo", eb, ones_s,
                         preferred_element_type=f32)       # (TB, L, 1)  = sum_s eb

    # Zero-length guard (the reference produces inf/nan for zero lengths; we return x).
    inv_t = 1.0 / jnp.maximum(tlen, 1).astype(f32)         # (TB, 1, 1)
    inv_s = 1.0 / jnp.maximum(slen, 1).astype(f32)

    # Fold mask + 1/denominator + 1/length into thin vectors -- no full-size
    # normalization multiplies, no materialized alpha/beta.
    vec_a = mask_tgt_col.astype(f32) * (inv_t / denom_a)   # (TB, LS, 1)
    vec_b = mask_src.astype(f32) * (inv_s / denom_b)       # (TB, L, 1)

    # Masked means as MXU matvecs; results land directly in the (.,1) gate layout.
    avg_alpha = jnp.einsum("bls,bso->blo", ea, vec_a,
                           preferred_element_type=f32)     # (TB, L, 1)
    avg_beta = jnp.einsum("bls,blo->bso", eb, vec_b,
                          preferred_element_type=f32)      # (TB, LS, 1)

    # x + x*avg == x*(1+avg); wide multiply in the I/O dtype, only the gates are f32.
    gate_s = (1.0 + avg_alpha).astype(s.dtype)
    gate_t = (1.0 + avg_beta).astype(t.dtype)
    out_s_ref[...] = (s * gate_s).astype(out_s_ref.dtype)
    out_t_ref[...] = (t * gate_t).astype(out_t_ref.dtype)


def _physical_vmem_bytes():
    """Best-effort physical VMEM capacity; conservative (v7x, 64 MiB) fallback."""
    try:
        cap = getattr(pltpu.get_tpu_info(), "vmem_capacity_bytes", None)
        if cap:
            return int(cap)
    except Exception:
        pass
    return 64 << 20


def _pick_batch_tile(B, L, LS, H, itemsize, vmem_budget_bytes, io_target_bytes=4 << 20):
    """Pick the most useful divisor of B under an explicit VMEM budget.

    Footprint model per batch element: double-buffered I/O tiles (in + out) plus ~4 live
    f32 (L, LS) score intermediates.  Preference order: even grid-step count >= 4 (keeps
    both v7x TensorCores fed, hides the pipeline prologue/epilogue), then I/O tile size
    up to ~4 MiB (amortizes the ~0.35 us/step overhead and tiny DMAs), then more steps.
    """
    per_b_io = (L + LS) * H * itemsize * 2          # input + output bytes per batch elem
    per_b_f32 = 4 * L * LS * 4                      # ~4 live f32 (L,LS) intermediates
    best_score, best_tb = None, 1
    for tb in range(1, B + 1):
        if B % tb:
            continue
        footprint = 2 * tb * per_b_io + tb * per_b_f32   # x2: BlockSpec double-buffering
        if tb > 1 and footprint > vmem_budget_bytes:
            continue
        steps = B // tb
        good_steps = 1 if (steps >= 4 and steps % 2 == 0) else 0
        score = (good_steps, min(tb * per_b_io, io_target_bytes), steps)
        if best_score is None or score > best_score:
            best_score, best_tb = score, tb
    return best_tb


def rsa_block(source_input, source_lengths, target_input, target_lengths, batch_tile=None):
    B, L, H = source_input.shape
    LS = target_input.shape[1]
    # NOTE: prefer H a multiple of 128 (lane-dense stores); for bf16 inputs prefer L, LS
    # multiples of 16 (sublane packing), for f32 multiples of 8.
    # TODO(synk): for H < 128, add a wrapper-side reshape presenting a lane-dense output
    # slab (fold L into the lane axis for the final gating store).

    # Tiny (B,1,1) int32 lengths as ordinary VMEM inputs (index_maps never need them, so
    # no scalar prefetch and no per-TB scalar-broadcast chain in the kernel).
    slen = jnp.asarray(source_lengths, jnp.int32).reshape(B, 1, 1)
    tlen = jnp.asarray(target_lengths, jnp.int32).reshape(B, 1, 1)

    itemsize = jnp.dtype(source_input.dtype).itemsize
    phys_vmem = _physical_vmem_bytes()
    vmem_budget = min(phys_vmem * 3 // 8, 24 << 20)   # ~24 MiB cap keeps v7x (64 MiB) safe
    vmem_limit = int(min(phys_vmem // 2, 32 << 20))

    TB = batch_tile if batch_tile is not None else _pick_batch_tile(
        B, L, LS, H, itemsize, vmem_budget)
    assert B % TB == 0, "batch tile must divide batch size"
    # TODO(synk): for very large L*LS where even TB=1 exceeds the VMEM budget, tile the
    # target (LS) axis inside the kernel with an online source-axis softmax.

    grid_spec = pltpu.PrefetchScalarGridSpec(
        num_scalar_prefetch=0,
        grid=(B // TB,),
        in_specs=[
            pl.BlockSpec((TB, 1, 1), lambda b: (b, 0, 0)),
            pl.BlockSpec((TB, 1, 1), lambda b: (b, 0, 0)),
            pl.BlockSpec((TB, L, H), lambda b: (b, 0, 0)),
            pl.BlockSpec((TB, LS, H), lambda b: (b, 0, 0)),
        ],
        out_specs=[
            pl.BlockSpec((TB, L, H), lambda b: (b, 0, 0)),
            pl.BlockSpec((TB, LS, H), lambda b: (b, 0, 0)),
        ],
    )

    return pl.pallas_call(
        rsa_kernel,
        out_shape=(
            jax.ShapeDtypeStruct((B, L, H), source_input.dtype),
            jax.ShapeDtypeStruct((B, LS, H), target_input.dtype),
        ),
        grid_spec=grid_spec,
        compiler_params=pltpu.CompilerParams(
            dimension_semantics=("parallel",),
            vmem_limit_bytes=vmem_limit,
        ),
    )(slen, tlen, source_input, target_input)


def rsa_block_ref(source, slen, target, tlen):
    """Pure-JAX (f32) reference of the same forward pass."""
    B, L, H = source.shape
    LS = target.shape[1]
    s = source.astype(jnp.float32)
    t = target.astype(jnp.float32)
    M = jnp.einsum("blh,bmh->blm", s, t, precision=lax.Precision.HIGHEST)  # (B, L, LS)

    sl = jnp.asarray(slen, jnp.int32).reshape(B, 1, 1)
    tl = jnp.asarray(tlen, jnp.int32).reshape(B, 1, 1)
    src_mask = jnp.arange(L)[None, :, None] < sl    # (B, L, 1)
    tgt_mask = jnp.arange(LS)[None, None, :] < tl   # (B, 1, LS)

    neg = jnp.float32(-1e9)
    alpha = jax.nn.softmax(jnp.where(src_mask, M, neg), axis=1)
    beta = jax.nn.softmax(jnp.where(tgt_mask, M, neg), axis=2)

    avg_alpha = jnp.sum(jnp.where(tgt_mask, alpha, 0.0), axis=2, keepdims=True) \
        / tl.astype(jnp.float32)                                                # (B, L, 1)
    avg_beta = jnp.sum(jnp.where(src_mask, beta, 0.0), axis=1, keepdims=True) \
        / sl.astype(jnp.float32)                                                # (B, 1, LS)
    avg_beta = jnp.swapaxes(avg_beta, 1, 2)                                     # (B, LS, 1)

    return s + s * avg_alpha, t + t * avg_beta


if __name__ == "__main__":
    # bf16 end-to-end (halves HBM bytes, native MXU rate); H lane-dense, L/LS sublane-packed.
    B, L, LS, H = 8, 16, 16, 128
    key = jax.random.PRNGKey(0)
    k1, k2 = jax.random.split(key)

    source = jax.random.normal(k1, (B, L, H), dtype=jnp.float32).astype(jnp.bfloat16)
    target = jax.random.normal(k2, (B, LS, H), dtype=jnp.float32).astype(jnp.bfloat16)
    source_lengths = jnp.array([[6], [16], [3], [12], [5], [1], [7], [16]], dtype=jnp.int32)
    target_lengths = jnp.array([[16], [5], [9], [12], [2], [16], [8], [11]], dtype=jnp.int32)

    ret_s, ret_t = rsa_block(source, source_lengths, target, target_lengths)
    jax.block_until_ready((ret_s, ret_t))

    ref_s, ref_t = rsa_block_ref(source, source_lengths, target, target_lengths)
    assert jnp.allclose(ret_s.astype(jnp.float32), ref_s, atol=2e-2, rtol=2e-2), \
        "source output mismatch"
    assert jnp.allclose(ret_t.astype(jnp.float32), ref_t, atol=2e-2, rtol=2e-2), \
        "target output mismatch"

    print("KERNEL_OK")
</pallas_src>

<mosaic_0001>
module attributes {stable_mosaic.version = 11 : i64} {
  func.func @rsa_kernel(%arg0: i32, %arg1: memref<2x1x1xi32, #tpu.memory_space<vmem>>, %arg2: memref<2x1x1xi32, #tpu.memory_space<vmem>>, %arg3: memref<2x16x128xbf16, #tpu.memory_space<vmem>>, %arg4: memref<2x16x128xbf16, #tpu.memory_space<vmem>>, %arg5: memref<2x16x128xbf16, #tpu.memory_space<vmem>>, %arg6: memref<2x16x128xbf16, #tpu.memory_space<vmem>>) attributes {dimension_semantics = [#tpu.dimension_semantics<parallel>], iteration_bounds = array<i64: 4>, scalar_prefetch = 0 : i64, scratch_operands = 0 : i64, tpu.core_type = #tpu.core_type<tc>, window_params = [{transform_indices = @transform_0, window_bounds = array<i64: 2, 1, 1>}, {transform_indices = @transform_1, window_bounds = array<i64: 2, 1, 1>}, {transform_indices = @transform_2, window_bounds = array<i64: 2, 16, 128>}, {transform_indices = @transform_3, window_bounds = array<i64: 2, 16, 128>}, {transform_indices = @transform_4, window_bounds = array<i64: 2, 16, 128>}, {transform_indices = @transform_5, window_bounds = array<i64: 2, 16, 128>}]} {
    %c0 = arith.constant 0 : index
    %c0_0 = arith.constant 0 : index
    %c0_1 = arith.constant 0 : index
    %0 = vector.load %arg1[%c0, %c0_0, %c0_1] : memref<2x1x1xi32, #tpu.memory_space<vmem>>, vector<2x1x1xi32>
    %c0_2 = arith.constant 0 : index
    %c0_3 = arith.constant 0 : index
    %c0_4 = arith.constant 0 : index
    %1 = vector.load %arg2[%c0_2, %c0_3, %c0_4] : memref<2x1x1xi32, #tpu.memory_space<vmem>>, vector<2x1x1xi32>
    %c0_5 = arith.constant 0 : index
    %c0_6 = arith.constant 0 : index
    %c0_7 = arith.constant 0 : index
    %2 = vector.load %arg3[%c0_5, %c0_6, %c0_7] : memref<2x16x128xbf16, #tpu.memory_space<vmem>>, vector<2x16x128xbf16>
    %c0_8 = arith.constant 0 : index
    %c0_9 = arith.constant 0 : index
    %c0_10 = arith.constant 0 : index
    %3 = vector.load %arg4[%c0_8, %c0_9, %c0_10] : memref<2x16x128xbf16, #tpu.memory_space<vmem>>, vector<2x16x128xbf16>
    %cst = arith.constant dense<0.000000e+00> : vector<2x16x16xf32>
    %4 = tpu.matmul %2, %3, %cst {dimension_numbers = #tpu.dot_dimension_numbers<[2], [2], [1], [1], [0, 0, 0, 1, 1, 1], [0], [0]>} : vector<2x16x128xbf16>, vector<2x16x128xbf16>, vector<2x16x16xf32> -> vector<2x16x16xf32>
    %5 = tpu.iota {dimensions = array<i32: 1>} : vector<2x16x1xi32>
    %6 = vector.broadcast %0 : vector<2x1x1xi32> to vector<2x16x1xi32>
    %7 = arith.cmpi slt, %5, %6 : vector<2x16x1xi32>
    %8 = tpu.iota {dimensions = array<i32: 2>} : vector<2x1x16xi32>
    %9 = vector.broadcast %1 : vector<2x1x1xi32> to vector<2x1x16xi32>
    %10 = arith.cmpi slt, %8, %9 : vector<2x1x16xi32>
    %11 = tpu.iota {dimensions = array<i32: 1>} : vector<2x16x1xi32>
    %12 = vector.broadcast %1 : vector<2x1x1xi32> to vector<2x16x1xi32>
    %13 = arith.cmpi slt, %11, %12 : vector<2x16x1xi32>
    %cst_11 = arith.constant -1.000000e+09 : f32
    %14 = vector.shape_cast %7 : vector<2x16x1xi1> to vector<2x16x1xi1>
    %15 = vector.broadcast %14 : vector<2x16x1xi1> to vector<2x16x16xi1>
    %16 = vector.broadcast %cst_11 : f32 to vector<2x16x16xf32>
    %17 = arith.select %15, %4, %16 : vector<2x16x16xi1>, vector<2x16x16xf32>
    %cst_12 = arith.constant -1.000000e+09 : f32
    %18 = vector.shape_cast %10 : vector<2x1x16xi1> to vector<2x1x16xi1>
    %19 = vector.broadcast %18 : vector<2x1x16xi1> to vector<2x16x16xi1>
    %20 = vector.broadcast %cst_12 : f32 to vector<2x16x16xf32>
    %21 = arith.select %19, %17, %20 : vector<2x16x16xi1>, vector<2x16x16xf32>
    %cst_13 = arith.constant dense<0xFF800000> : vector<2x16xf32>
    %22 = vector.multi_reduction <maximumf>, %21, %cst_13 [1] : vector<2x16x16xf32> to vector<2x16xf32>
    %23 = vector.shape_cast %22 : vector<2x16xf32> to vector<2x1x16xf32>
    %24 = vector.broadcast %23 : vector<2x1x16xf32> to vector<2x16x16xf32>
    %25 = arith.subf %21, %24 : vector<2x16x16xf32>
    %26 = math.exp %25 : vector<2x16x16xf32>
    %cst_14 = arith.constant dense<0xFF800000> : vector<2x16xf32>
    %27 = vector.multi_reduction <maximumf>, %21, %cst_14 [2] : vector<2x16x16xf32> to vector<2x16xf32>
    %28 = vector.shape_cast %27 : vector<2x16xf32> to vector<2x16x1xf32>
    %29 = vector.broadcast %28 : vector<2x16x1xf32> to vector<2x16x16xf32>
    %30 = arith.subf %21, %29 : vector<2x16x16xf32>
    %31 = math.exp %30 : vector<2x16x16xf32>
    %cst_15 = arith.constant 1.000000e+00 : f32
    %32 = vector.broadcast %cst_15 : f32 to vector<2x16x1xf32>
    %cst_16 = arith.constant 1.000000e+00 : f32
    %33 = vector.broadcast %cst_16 : f32 to vector<2x16x1xf32>
    "tpu.trace_start"() <{level = 10 : i32, message = "bls,blo->bso"}> : () -> ()
    %cst_17 = arith.constant dense<0.000000e+00> : vector<2x16x1xf32>
    %34 = tpu.matmul %26, %32, %cst_17 {dimension_numbers = #tpu.dot_dimension_numbers<[1], [1], [2], [2], [0, 0, 0, 2, 1, 2], [0], [0]>} : vector<2x16x16xf32>, vector<2x16x1xf32>, vector<2x16x1xf32> -> vector<2x16x1xf32>
    "tpu.trace_stop"() : () -> ()
    "tpu.trace_start"() <{level = 10 : i32, message = "bls,bso->blo"}> : () -> ()
    %cst_18 = arith.constant dense<0.000000e+00> : vector<2x16x1xf32>
    %35 = tpu.matmul %31, %33, %cst_18 {dimension_numbers = #tpu.dot_dimension_numbers<[2], [1], [1], [2], [0, 0, 0, 1, 1, 2], [0], [0]>} : vector<2x16x16xf32>, vector<2x16x1xf32>, vector<2x16x1xf32> -> vector<2x16x1xf32>
    "tpu.trace_stop"() : () -> ()
    %c1_i32 = arith.constant 1 : i32
    %36 = vector.broadcast %c1_i32 : i32 to vector<2x1x1xi32>
    %37 = arith.maxsi %1, %36 : vector<2x1x1xi32>
    %38 = arith.sitofp %37 : vector<2x1x1xi32> to vector<2x1x1xf32>
    %cst_19 = arith.constant 1.000000e+00 : f32
    %39 = vector.broadcast %cst_19 : f32 to vector<2x1x1xf32>
    %40 = arith.divf %39, %38 : vector<2x1x1xf32>
    %c1_i32_20 = arith.constant 1 : i32
    %41 = vector.broadcast %c1_i32_20 : i32 to vector<2x1x1xi32>
    %42 = arith.maxsi %0, %41 : vector<2x1x1xi32>
    %43 = arith.sitofp %42 : vector<2x1x1xi32> to vector<2x1x1xf32>
    %cst_21 = arith.constant 1.000000e+00 : f32
    %44 = vector.broadcast %cst_21 : f32 to vector<2x1x1xf32>
    %45 = arith.divf %44, %43 : vector<2x1x1xf32>
    %46 = arith.extui %13 : vector<2x16x1xi1> to vector<2x16x1xi32>
    %47 = arith.sitofp %46 : vector<2x16x1xi32> to vector<2x16x1xf32>
    %48 = vector.broadcast %40 : vector<2x1x1xf32> to vector<2x16x1xf32>
    %49 = arith.divf %48, %34 : vector<2x16x1xf32>
    %50 = arith.mulf %47, %49 : vector<2x16x1xf32>
    %51 = arith.extui %7 : vector<2x16x1xi1> to vector<2x16x1xi32>
    %52 = arith.sitofp %51 : vector<2x16x1xi32> to vector<2x16x1xf32>
    %53 = vector.broadcast %45 : vector<2x1x1xf32> to vector<2x16x1xf32>
    %54 = arith.divf %53, %35 : vector<2x16x1xf32>
    %55 = arith.mulf %52, %54 : vector<2x16x1xf32>
    "tpu.trace_start"() <{level = 10 : i32, message = "bls,bso->blo"}> : () -> ()
    %cst_22 = arith.constant dense<0.000000e+00> : vector<2x16x1xf32>
    %56 = tpu.matmul %26, %50, %cst_22 {dimension_numbers = #tpu.dot_dimension_numbers<[2], [1], [1], [2], [0, 0, 0, 1, 1, 2], [0], [0]>} : vector<2x16x16xf32>, vector<2x16x1xf32>, vector<2x16x1xf32> -> vector<2x16x1xf32>
    "tpu.trace_stop"() : () -> ()
    "tpu.trace_start"() <{level = 10 : i32, message = "bls,blo->bso"}> : () -> ()
    %cst_23 = arith.constant dense<0.000000e+00> : vector<2x16x1xf32>
    %57 = tpu.matmul %31, %55, %cst_23 {dimension_numbers = #tpu.dot_dimension_numbers<[1], [1], [2], [2], [0, 0, 0, 2, 1, 2], [0], [0]>} : vector<2x16x16xf32>, vector<2x16x1xf32>, vector<2x16x1xf32> -> vector<2x16x1xf32>
    "tpu.trace_stop"() : () -> ()
    %cst_24 = arith.constant 1.000000e+00 : f32
    %58 = vector.broadcast %cst_24 : f32 to vector<2x16x1xf32>
    %59 = arith.addf %58, %56 : vector<2x16x1xf32>
    %60 = arith.truncf %59 : vector<2x16x1xf32> to vector<2x16x1xbf16>
    %cst_25 = arith.constant 1.000000e+00 : f32
    %61 = vector.broadcast %cst_25 : f32 to vector<2x16x1xf32>
    %62 = arith.addf %61, %57 : vector<2x16x1xf32>
    %63 = arith.truncf %62 : vector<2x16x1xf32> to vector<2x16x1xbf16>
    %64 = vector.broadcast %60 : vector<2x16x1xbf16> to vector<2x16x128xbf16>
    %65 = arith.mulf %2, %64 : vector<2x16x128xbf16>
    %c0_26 = arith.constant 0 : index
    %c0_27 = arith.constant 0 : index
    %c0_28 = arith.constant 0 : index
    %66 = vector.load %arg5[%c0_26, %c0_27, %c0_28] : memref<2x16x128xbf16, #tpu.memory_space<vmem>>, vector<2x16x128xbf16>
    tpu.vector_store %arg5[%c0_26, %c0_27, %c0_28], %65 {strides = array<i32>} : memref<2x16x128xbf16, #tpu.memory_space<vmem>>, vector<2x16x128xbf16>,
    %67 = vector.broadcast %63 : vector<2x16x1xbf16> to vector<2x16x128xbf16>
    %68 = arith.mulf %3, %67 : vector<2x16x128xbf16>
    %c0_29 = arith.constant 0 : index
    %c0_30 = arith.constant 0 : index
    %c0_31 = arith.constant 0 : index
    %69 = vector.load %arg6[%c0_29, %c0_30, %c0_31] : memref<2x16x128xbf16, #tpu.memory_space<vmem>>, vector<2x16x128xbf16>
    tpu.vector_store %arg6[%c0_29, %c0_30, %c0_31], %68 {strides = array<i32>} : memref<2x16x128xbf16, #tpu.memory_space<vmem>>, vector<2x16x128xbf16>,
    return
  }
  func.func @transform_0(%arg0: i32) -> (i32, i32, i32) {
    %c0_i32 = arith.constant 0 : i32
    %c0_i32_0 = arith.constant 0 : i32
    %c0_i32_1 = arith.constant 0 : i32
    return %arg0, %c0_i32, %c0_i32_0 : i32, i32, i32
  }
  func.func @transform_1(%arg0: i32) -> (i32, i32, i32) {
    %c0_i32 = arith.constant 0 : i32
    %c0_i32_0 = arith.constant 0 : i32
    %c0_i32_1 = arith.constant 0 : i32
    return %arg0, %c0_i32, %c0_i32_0 : i32, i32, i32
  }
  func.func @transform_2(%arg0: i32) -> (i32, i32, i32) {
    %c0_i32 = arith.constant 0 : i32
    %c0_i32_0 = arith.constant 0 : i32
    %c0_i32_1 = arith.constant 0 : i32
    return %arg0, %c0_i32, %c0_i32_0 : i32, i32, i32
  }
  func.func @transform_3(%arg0: i32) -> (i32, i32, i32) {
    %c0_i32 = arith.constant 0 : i32
    %c0_i32_0 = arith.constant 0 : i32
    %c0_i32_1 = arith.constant 0 : i32
    return %arg0, %c0_i32, %c0_i32_0 : i32, i32, i32
  }
  func.func @transform_4(%arg0: i32) -> (i32, i32, i32) {
    %c0_i32 = arith.constant 0 : i32
    %c0_i32_0 = arith.constant 0 : i32
    %c0_i32_1 = arith.constant 0 : i32
    return %arg0, %c0_i32, %c0_i32_0 : i32, i32, i32
  }
  func.func @transform_5(%arg0: i32) -> (i32, i32, i32) {
    %c0_i32 = arith.constant 0 : i32
    %c0_i32_0 = arith.constant 0 : i32
    %c0_i32_1 = arith.constant 0 : i32
    return %arg0, %c0_i32, %c0_i32_0 : i32, i32, i32
  }
}

</mosaic_0001>

<llo_original>
// kernel: tpu_custom_call.1
$region0: #{tpu_custom_call.1}
  #allocation0 [shape = 'u32[]', space=smem, size = 0x4, offset = 0x4, fixed_abs, tag = 'smem constant byte address 0x4 - core index']
  #allocation1 [shape = 'u32[72,128]{1,0:T(1,128)}', space=vmem, size = 0x9000, scoped, tag = 'internal scratch']
  %s0 = inlined_call_operand.vmem [shape: s32[8,1,1], index: 0, kind: input, shape index: {}]
  %s1 = inlined_call_operand.vmem [shape: s32[8,1,1], index: 1, kind: input, shape index: {}]
  %s2 = inlined_call_operand.hbm [shape: bf16[8,16,128], index: 2, kind: input, shape index: {}]
  %s3 = inlined_call_operand.hbm [shape: bf16[8,16,128], index: 3, kind: input, shape index: {}]
  %s4 = inlined_call_operand.hbm [shape: bf16[8,16,128], index: 4, kind: output, shape index: {0}]
  %s5 = inlined_call_operand.hbm [shape: bf16[8,16,128], index: 5, kind: output, shape index: {1}]
  %6 = xla_tuple %s4, %s5
  %s7 = sld [smem:[#allocation0]]
  $region65: #{tpu_custom_call.1} parent=0
    _
  %s9 = ssub.s32 1, %s7
  %s10 = scalar_select 0, %s9, %s7
  $region1: #{tpu_custom_call.1} parent=0
    #allocation2 [shape = 'u8[16384]{0}', space=vmem, size = 0x4000, scoped, tag = 'input window, operand 2']
    #allocation3 [shape = 's32[2]{0}', space=sflag, size = 0x8, scoped, tag = 'scoped memory for tpu_custom_call.1']
    #allocation4 [shape = 's32[2]{0}', space=sflag, size = 0x8, scoped, tag = 'scoped memory for tpu_custom_call.1']
    #allocation5 [shape = 'u8[16384]{0}', space=vmem, size = 0x4000, scoped, tag = 'input window, operand 3']
    #allocation6 [shape = 's32[2]{0}', space=sflag, size = 0x8, scoped, tag = 'scoped memory for tpu_custom_call.1']
    #allocation7 [shape = 'u8[16384]{0}', space=vmem, size = 0x4000, scoped, tag = 'output window, operand 0']
    #allocation8 [shape = 'u8[16384]{0}', space=vmem, size = 0x4000, scoped, tag = 'output window, operand 1']
    #allocation9 [shape = 's32[2]{0}', space=sflag, size = 0x8, scoped, tag = 'scoped memory for tpu_custom_call.1']
    %11 = vsyncpa [#allocation3], 0
    %s12 = scalar_lea.sflag [#allocation3], 1
    %13 = vsyncpa %s12, 0
    %14 = vsyncpa [#allocation6], 0
    %s15 = scalar_lea.sflag [#allocation6], 1
    %16 = vsyncpa %s15, 0
    %17 = vsyncpa [#allocation4], 0
    %s18 = scalar_lea.sflag [#allocation4], 1
    %19 = vsyncpa %s18, 0
    %20 = vsyncpa [#allocation9], 0
    %s21 = scalar_lea.sflag [#allocation9], 1
    %22 = vsyncpa %s21, 0
    loop: start=0, step=1, limit=6
    $region2: #{tpu_custom_call.1} parent=1 // loop_pre_header
      _
    $region3: #{tpu_custom_call.1} parent=1 // loop_header
      %s24 = sphi 0, %s28
      %p25 = scmp.ge.s32.totalorder %s24, 6
      %s34 = sphi 0, %s36
      %s37 = sphi 0, %s34
      %s38 = sphi 0, %s37
      %s54 = sphi 0, %s38
      %s60 = sphi 0, %s62
      %s63 = sphi 0, %s60
      %s64 = sphi 0, %s63
      %s80 = sphi 0, %s64
      %s86 = sphi 0, %s88
      %s89 = sphi 0, %s86
      %s90 = sphi 0, %s89
      %s106 = sphi 0, %s90
      %s112 = sphi 0, %s114
      %s115 = sphi 0, %s112
      %s116 = sphi 0, %s115
      %s132 = sphi 0, %s116
      %s138 = sphi 0, %s140
      %s141 = sphi 0, %s138
      %s142 = sphi 0, %s141
      %s158 = sphi 0, %s142
      %s164 = sphi 0, %s166
      %s167 = sphi 0, %s164
      %s168 = sphi 0, %s167
      %s184 = sphi 0, %s168
    $region4: #{tpu_custom_call.1} parent=1 // loop_header_branch
      %27 = sbr.rel (%p25) target = $region8
    $region5: #{tpu_custom_call.1} parent=1 // loop_body
      %s29 = ssub.s32 %s24, 1
      %s30 = ssub.s32 %s24, 2
      %s31 = sadd.s32 %s24, 1
      %s32 = ssub.s32 %s24, %s31
      %p33 = scmp.eq.s32.totalorder %s32, 0
      %s35 = sadd.s32 %s34, 1
      %s36 = scalar_select %p33, %s34, %s35
      %p39 = pneg %p33
      %p40 = scmp.eq.s32.totalorder %s24, 3
      %p41 = por %p39, %p40
      %p42 = scmp.ne.s32.totalorder %s34, %s37
      %p43 = scmp.eq.s32.totalorder %s24, 0
      %p44 = por %p42, %p43
      %p45 = scmp.ne.s32.totalorder %s34, %s37
      %p46 = scmp.eq.s32.totalorder %s29, 3
      %p47 = por %p45, %p46
      %p48 = scmp.ne.s32.totalorder %s37, %s38
      %p49 = scmp.eq.s32.totalorder %s29, 0
      %p50 = por %p48, %p49
      %p51 = scmp.ne.s32.totalorder %s37, %s38
      %p52 = scmp.eq.s32.totalorder %s30, 3
      %p53 = por %p51, %p52
      %p55 = scmp.ne.s32.totalorder %s38, %s54
      %p56 = scmp.eq.s32.totalorder %s30, 0
      %p57 = por %p55, %p56
      %s58 = ssub.s32 %s24, %s31
      %p59 = scmp.eq.s32.totalorder %s58, 0
      %s61 = sadd.s32 %s60, 1
      %s62 = scalar_select %p59, %s60, %s61
      %p65 = pneg %p59
      %p66 = scmp.eq.s32.totalorder %s24, 3
      %p67 = por %p65, %p66
      %p68 = scmp.ne.s32.totalorder %s60, %s63
      %p69 = scmp.eq.s32.totalorder %s24, 0
      %p70 = por %p68, %p69
      %p71 = scmp.ne.s32.totalorder %s60, %s63
      %p72 = scmp.eq.s32.totalorder %s29, 3
      %p73 = por %p71, %p72
      %p74 = scmp.ne.s32.totalorder %s63, %s64
      %p75 = scmp.eq.s32.totalorder %s29, 0
      %p76 = por %p74, %p75
      %p77 = scmp.ne.s32.totalorder %s63, %s64
      %p78 = scmp.eq.s32.totalorder %s30, 3
      %p79 = por %p77, %p78
      %p81 = scmp.ne.s32.totalorder %s64, %s80
      %p82 = scmp.eq.s32.totalorder %s30, 0
      %p83 = por %p81, %p82
      %s84 = ssub.s32 %s24, %s31
      %p85 = scmp.eq.s32.totalorder %s84, 0
      %s87 = sadd.s32 %s86, 1
      %s88 = scalar_select %p85, %s86, %s87
      %p91 = pneg %p85
      %p92 = scmp.eq.s32.totalorder %s24, 3
      %p93 = por %p91, %p92
      %p94 = scmp.ne.s32.totalorder %s86, %s89
      %p95 = scmp.eq.s32.totalorder %s24, 0
      %p96 = por %p94, %p95
      %p97 = scmp.ne.s32.totalorder %s86, %s89
      %p98 = scmp.eq.s32.totalorder %s29, 3
      %p99 = por %p97, %p98
      %p100 = scmp.ne.s32.totalorder %s89, %s90
      %p101 = scmp.eq.s32.totalorder %s29, 0
      %p102 = por %p100, %p101
      %p103 = scmp.ne.s32.totalorder %s89, %s90
      %p104 = scmp.eq.s32.totalorder %s30, 3
      %p105 = por %p103, %p104
      %p107 = scmp.ne.s32.totalorder %s90, %s106
      %p108 = scmp.eq.s32.totalorder %s30, 0
      %p109 = por %p107, %p108
      %s110 = ssub.s32 %s24, %s31
      %p111 = scmp.eq.s32.totalorder %s110, 0
      %s113 = sadd.s32 %s112, 1
      %s114 = scalar_select %p111, %s112, %s113
      %p117 = pneg %p111
      %p118 = scmp.eq.s32.totalorder %s24, 3
      %p119 = por %p117, %p118
      %p120 = scmp.ne.s32.totalorder %s112, %s115
      %p121 = scmp.eq.s32.totalorder %s24, 0
      %p122 = por %p120, %p121
      %p123 = scmp.ne.s32.totalorder %s112, %s115
      %p124 = scmp.eq.s32.totalorder %s29, 3
      %p125 = por %p123, %p124
      %p126 = scmp.ne.s32.totalorder %s115, %s116
      %p127 = scmp.eq.s32.totalorder %s29, 0
      %p128 = por %p126, %p127
      %p129 = scmp.ne.s32.totalorder %s115, %s116
      %p130 = scmp.eq.s32.totalorder %s30, 3
      %p131 = por %p129, %p130
      %p133 = scmp.ne.s32.totalorder %s116, %s132
      %p134 = scmp.eq.s32.totalorder %s30, 0
      %p135 = por %p133, %p134
      %s136 = ssub.s32 %s24, %s31
      %p137 = scmp.eq.s32.totalorder %s136, 0
      %s139 = sadd.s32 %s138, 1
      %s140 = scalar_select %p137, %s138, %s139
      %p143 = pneg %p137
      %p144 = scmp.eq.s32.totalorder %s24, 3
      %p145 = por %p143, %p144
      %p146 = scmp.ne.s32.totalorder %s138, %s141
      %p147 = scmp.eq.s32.totalorder %s24, 0
      %p148 = por %p146, %p147
      %p149 = scmp.ne.s32.totalorder %s138, %s141
      %p150 = scmp.eq.s32.totalorder %s29, 3
      %p151 = por %p149, %p150
      %p152 = scmp.ne.s32.totalorder %s141, %s142
      %p153 = scmp.eq.s32.totalorder %s29, 0
      %p154 = por %p152, %p153
      %p155 = scmp.ne.s32.totalorder %s141, %s142
      %p156 = scmp.eq.s32.totalorder %s30, 3
      %p157 = por %p155, %p156
      %p159 = scmp.ne.s32.totalorder %s142, %s158
      %p160 = scmp.eq.s32.totalorder %s30, 0
      %p161 = por %p159, %p160
      %s162 = ssub.s32 %s24, %s31
      %p163 = scmp.eq.s32.totalorder %s162, 0
      %s165 = sadd.s32 %s164, 1
      %s166 = scalar_select %p163, %s164, %s165
      %p169 = pneg %p163
      %p170 = scmp.eq.s32.totalorder %s24, 3
      %p171 = por %p169, %p170
      %p172 = scmp.ne.s32.totalorder %s164, %s167
      %p173 = scmp.eq.s32.totalorder %s24, 0
      %p174 = por %p172, %p173
      %p175 = scmp.ne.s32.totalorder %s164, %s167
      %p176 = scmp.eq.s32.totalorder %s29, 3
      %p177 = por %p175, %p176
      %p178 = scmp.ne.s32.totalorder %s167, %s168
      %p179 = scmp.eq.s32.totalorder %s29, 0
      %p180 = por %p178, %p179
      %p181 = scmp.ne.s32.totalorder %s167, %s168
      %p182 = scmp.eq.s32.totalorder %s30, 3
      %p183 = por %p181, %p182
      %p185 = scmp.ne.s32.totalorder %s168, %s184
      %p186 = scmp.eq.s32.totalorder %s30, 0
      %p187 = por %p185, %p186
      %p188 = scmp.le.s32.totalorder 1, %s24
      %p189 = scmp.lt.s32.totalorder %s24, 5
      %p190 = pnand %p188, %p189
      %p191 = pneg %p190
      // Predicated region
      $region9: #{tpu_custom_call.1} parent=5 // pred_check
        _
      $region10: #{tpu_custom_call.1} parent=5 // pred_check_branch
        %193 = sbr.rel (%p190) target = $region12
      $region11: #{tpu_custom_call.1} parent=5 // pred_region
        %s194 = ssub.s32 %s24, 1
      $region12: #{tpu_custom_call.1} parent=5 // pred_fallthru
        _
      %p195 = scmp.lt.s32.totalorder %s24, 4
      // Predicated region
      $region13: #{tpu_custom_call.1} parent=5 // pred_check
        %p196 = pneg %p195
      $region14: #{tpu_custom_call.1} parent=5 // pred_check_branch
        %198 = sbr.rel (%p196) target = $region16
      $region15: #{tpu_custom_call.1} parent=5 // pred_region
        // Predicated region
        $region17: #{tpu_custom_call.1} parent=15 // pred_check
          %p199 = pneg %p44
        $region18: #{tpu_custom_call.1} parent=15 // pred_check_branch
          %201 = sbr.rel (%p199) target = $region20
        $region19: #{tpu_custom_call.1} parent=15 // pred_region
          %s202 = smul.u32 2, %s24
          %p203 = scmp.lt.s32.totalorder %s202, 7
          %s204 = scalar_select %p203, %s202, 7
          %s205 = scalar_lea.vmem %s0, %s204
          %s206 = smul.u32 2, %s24
        $region20: #{tpu_custom_call.1} parent=15 // pred_fallthru
          _
        // Predicated region
        $region21: #{tpu_custom_call.1} parent=15 // pred_check
          %p207 = pneg %p70
        $region22: #{tpu_custom_call.1} parent=15 // pred_check_branch
          %209 = sbr.rel (%p207) target = $region24
        $region23: #{tpu_custom_call.1} parent=15 // pred_region
          %s210 = smul.u32 2, %s24
          %p211 = scmp.lt.s32.totalorder %s210, 7
          %s212 = scalar_select %p211, %s210, 7
          %s213 = scalar_lea.vmem %s1, %s212
          %s214 = smul.u32 2, %s24
        $region24: #{tpu_custom_call.1} parent=15 // pred_fallthru
          _
        // Predicated region
        $region25: #{tpu_custom_call.1} parent=15 // pred_check
          %p215 = pneg %p96
        $region26: #{tpu_custom_call.1} parent=15 // pred_check_branch
          %217 = sbr.rel (%p215) target = $region28
        $region27: #{tpu_custom_call.1} parent=15 // pred_region
          %s218 = sand.u32 %s86, 1
          %s219 = scalar_lea.sflag [#allocation3], %s218
          %s220 = sand.u32 %s86, 1
          %s221 = smul.addr %s220, 16
          %s222 = scalar_lea.vmem [#allocation2], %s221
          %s223 = smul.u32 2, %s24
          %225 = vsyncadd %s219, 0
          %s226 = smul.addr %s223, 2
          %s227 = smul.addr %s226, 4
          %s228 = scalar_lea.hbm %s2, %s227
          %s229 = sshll.u32 %s228, 4
          %s230 = int_to_ptr.hbm [resolvable:$true] %s229
          %s231 = sshll.u32 %s222, 4
          %s232 = int_to_ptr.vmem [resolvable:$true] %s231
          %237 = dma.hbm_to_vmem [thread:$0]  %s230, 256, %s232, %s219, 64, 64, 4
        $region28: #{tpu_custom_call.1} parent=15 // pred_fallthru
          _
        // Predicated region
        $region29: #{tpu_custom_call.1} parent=15 // pred_check
          %p238 = pneg %p122
        $region30: #{tpu_custom_call.1} parent=15 // pred_check_branch
          %240 = sbr.rel (%p238) target = $region32
        $region31: #{tpu_custom_call.1} parent=15 // pred_region
          %s241 = sand.u32 %s112, 1
          %s242 = scalar_lea.sflag [#allocation6], %s241
          %s243 = sand.u32 %s112, 1
          %s244 = smul.addr %s243, 16
          %s245 = scalar_lea.vmem [#allocation5], %s244
          %s246 = smul.u32 2, %s24
          %248 = vsyncadd %s242, 0
          %s249 = smul.addr %s246, 2
          %s250 = smul.addr %s249, 4
          %s251 = scalar_lea.hbm %s3, %s250
          %s252 = sshll.u32 %s251, 4
          %s253 = int_to_ptr.hbm [resolvable:$true] %s252
          %s254 = sshll.u32 %s245, 4
          %s255 = int_to_ptr.vmem [resolvable:$true] %s254
          %260 = dma.hbm_to_vmem [thread:$0]  %s253, 256, %s255, %s242, 64, 64, 4
        $region32: #{tpu_custom_call.1} parent=15 // pred_fallthru
          _
      $region16: #{tpu_custom_call.1} parent=5 // pred_fallthru
        _
      %p261 = scmp.le.s32.totalorder 1, %s24
      %p262 = scmp.lt.s32.totalorder %s24, 5
      %p263 = pnand %p261, %p262
      %p264 = pneg %p263
      // Predicated region
      $region33: #{tpu_custom_call.1} parent=5 // pred_check
        _
      $region34: #{tpu_custom_call.1} parent=5 // pred_check_branch
        %266 = sbr.rel (%p263) target = $region36
      $region35: #{tpu_custom_call.1} parent=5 // pred_region
        %s267 = ssub.s32 %s24, 1
        %s268 = sand.u32 %s89, 1
        %s269 = scalar_lea.sflag [#allocation3], %s268
        %s270 = sand.u32 %s89, 1
        %s271 = smul.addr %s270, 16
        %s272 = scalar_lea.vmem [#allocation2], %s271
        // Predicated region
        $region37: #{tpu_custom_call.1} parent=35 // pred_check
          %p273 = pneg %p102
        $region38: #{tpu_custom_call.1} parent=35 // pred_check_branch
          %275 = sbr.rel (%p273) target = $region40
        $region39: #{tpu_custom_call.1} parent=35 // pred_region
          %277 = dma.done %s269, 256
        $region40: #{tpu_custom_call.1} parent=35 // pred_fallthru
          _
        %s278 = sand.u32 %s115, 1
        %s279 = scalar_lea.sflag [#allocation6], %s278
        %s280 = sand.u32 %s115, 1
        %s281 = smul.addr %s280, 16
        %s282 = scalar_lea.vmem [#allocation5], %s281
        // Predicated region
        $region41: #{tpu_custom_call.1} parent=35 // pred_check
          %p283 = pneg %p128
        $region42: #{tpu_custom_call.1} parent=35 // pred_check_branch
          %285 = sbr.rel (%p283) target = $region44
        $region43: #{tpu_custom_call.1} parent=35 // pred_region
          %287 = dma.done %s279, 256
        $region44: #{tpu_custom_call.1} parent=35 // pred_fallthru
          _
        %s288 = smul.u32 2, %s29
        %p289 = scmp.lt.s32.totalorder %s288, 7
        %s290 = scalar_select %p289, %s288, 7
        %s291 = scalar_lea.vmem %s0, %s290
        %p292 = pneg %p50
        %p293 = pneg %p47
        %s294 = smul.u32 2, %s29
        %p295 = scmp.lt.s32.totalorder %s294, 7
        %s296 = scalar_select %p295, %s294, 7
        %s297 = scalar_lea.vmem %s1, %s296
        %p298 = pneg %p76
        %p299 = pneg %p73
        %s300 = sand.u32 %s89, 1
        %s301 = scalar_lea.sflag [#allocation3], %s300
        %s302 = sand.u32 %s89, 1
        %s303 = smul.addr %s302, 16
        %s304 = scalar_lea.vmem [#allocation2], %s303
        %p305 = pneg %p102
        %p306 = pneg %p99
        %s307 = sand.u32 %s115, 1
        %s308 = scalar_lea.sflag [#allocation6], %s307
        %s309 = sand.u32 %s115, 1
        %s310 = smul.addr %s309, 16
        %s311 = scalar_lea.vmem [#allocation5], %s310
        %p312 = pneg %p128
        %p313 = pneg %p125
        %p314 = pneg %p154
        %p315 = pneg %p151
        %s316 = sand.u32 %s141, 1
        %s317 = scalar_lea.sflag [#allocation4], %s316
        %s318 = sand.u32 %s141, 1
        %s319 = smul.addr %s318, 16
        %s320 = scalar_lea.vmem [#allocation7], %s319
        %p321 = pneg %p180
        %p322 = pneg %p177
        %s323 = sand.u32 %s167, 1
        %s324 = scalar_lea.sflag [#allocation9], %s323
        %s325 = sand.u32 %s167, 1
        %s326 = smul.addr %s325, 16
        %s327 = scalar_lea.vmem [#allocation8], %s326
        %s328 = smul.u32 2, %s29
        %p329 = scmp.lt.s32.totalorder %s328, 7
        %s330 = scalar_select %p329, %s328, 7
        %s331 = scalar_lea.vmem %s0, %s330
        %s332 = smul.u32 2, %s29
        %s333 = smul.u32 2, %s29
        %p334 = scmp.lt.s32.totalorder %s333, 7
        %s335 = scalar_select %p334, %s333, 7
        %s336 = scalar_lea.vmem %s1, %s335
        %s337 = smul.u32 2, %s29
        %s338 = smul.u32 2, %s29
        %s339 = smul.u32 2, %s29
        %s340 = smul.u32 2, %s29
        %s341 = smul.u32 2, %s29
        %v343 = vld [vmem:[%s331] sm:$0x1]
        %v344 = vld [vmem:[%s331 + $0x1] sm:$0x1]
        %v345 = vld [vmem:[%s336] sm:$0x1]
        %v346 = vld [vmem:[%s336 + $0x1] sm:$0x1]
        %v347 = vld [vmem:[%s272] sm:$0xf]
        %v348 = vld [vmem:[%s272 + $0x4] sm:$0xf]
        %v349 = vld [vmem:[%s272 + $0x8] sm:$0xf]
        %v350 = vld [vmem:[%s272 + $0xc] sm:$0xf]
        %v351 = vld [vmem:[%s282] sm:$0xf]
        %v352 = vld [vmem:[%s282 + $0x4] sm:$0xf]
        %v353 = vld [vmem:[%s282 + $0x8] sm:$0xf]
        %v354 = vld [vmem:[%s282 + $0xc] sm:$0xf]
        %v357 = vunpack.c.l.b16 %v347
        %v358 = vunpack.c.l.b16 %v348
        %v359 = vpack.c.b16 %v358, %v357
        %v363 = vunpack.c.l.b16 %v351
        %v364 = vunpack.c.l.b16 %v352
        %v365 = vpack.c.b16 %v364, %v363
        %367 = vmatpush.bf16.xpose.msra.mxu0 0
        %368 = vmatpush.bf16.xpose.msra.mxu0 0
        %369 = vmatpush.bf16.xpose.msra.mxu0 0
        %370 = vmatpush.bf16.xpose.msra.mxu0 0
        %371 = vmatpush.bf16.xpose.msra.mxu0 0
        %372 = vmatpush.bf16.xpose.msra.mxu0 0
        %373 = vmatpush.bf16.xpose.msra.mxu0 0
        %374 = vmatpush.bf16.xpose.msra.mxu0 %v365
        %375 = vmatmul.bf16.gmra.mxu0 %v359
        %v376 = vpop.f32.mrf.mxu0
        %v377 = vadd.f32 0.0, %v376
        %v378 = vpop.f32.mrf.mxu0
        %v379 = vadd.f32 0.0, %v378
        %380 = vdwg.mxu0
        %v383 = vunpack.c.l.b16 %v349
        %v384 = vunpack.c.l.b16 %v350
        %v385 = vpack.c.b16 %v384, %v383
        %v389 = vunpack.c.l.b16 %v353
        %v390 = vunpack.c.l.b16 %v354
        %v391 = vpack.c.b16 %v390, %v389
        %393 = vmatpush.bf16.xpose.msra.mxu0 0
        %394 = vmatpush.bf16.xpose.msra.mxu0 0
        %395 = vmatpush.bf16.xpose.msra.mxu0 0
        %396 = vmatpush.bf16.xpose.msra.mxu0 0
        %397 = vmatpush.bf16.xpose.msra.mxu0 0
        %398 = vmatpush.bf16.xpose.msra.mxu0 0
        %399 = vmatpush.bf16.xpose.msra.mxu0 0
        %400 = vmatpush.bf16.xpose.msra.mxu0 %v391
        %401 = vmatmul.bf16.gmra.mxu0 %v385
        %v402 = vpop.f32.mrf.mxu0
        %v403 = vadd.f32 0.0, %v402
        %v404 = vpop.f32.mrf.mxu0
        %v405 = vadd.f32 0.0, %v404
        %406 = vdwg.mxu0
        %v407 = vlaneseq
        %v408 = vshrl.u32 %v407, 7
        %v409 = vadd.s32 %v408, 8
        %v410 = vperm.slane %v343, 0
        %v411 = vperm.slane %v344, 0
        %vm412 = vcmp.lt.s32.totalorder %v408, %v410
        %vm413 = vcmp.lt.s32.totalorder %v409, %v410
        %vm414 = vcmp.lt.s32.totalorder %v408, %v411
        %vm415 = vcmp.lt.s32.totalorder %v409, %v411
        %v416 = vlaneseq
        %v417 = vand.u32 %v416, 127
        %418 = vset.pattern.permute.xlu0 0
        %419 = vperm.xlu0 %418, %v345
        %v420 = vpop.permute.xlu0 %419
        %v421 = vperm.slane %v420, 0
        %422 = vset.pattern.permute.xlu0 0
        %423 = vperm.xlu0 %422, %v346
        %v424 = vpop.permute.xlu0 %423
        %v425 = vperm.slane %v424, 0
        %vm426 = vcmp.lt.s32.totalorder %v417, %v421
        %vm427 = vcmp.lt.s32.totalorder %v417, %v425
        %v428 = vperm.slane %v345, 0
        %v429 = vperm.slane %v346, 0
        %vm430 = vcmp.lt.s32.totalorder %v408, %v428
        %vm431 = vcmp.lt.s32.totalorder %v409, %v428
        %vm432 = vcmp.lt.s32.totalorder %v408, %v429
        %vm433 = vcmp.lt.s32.totalorder %v409, %v429
        %v434 = vsel %vm412, 1, 0
        %v435 = vsel %vm413, 1, 0
        %v436 = vsel %vm414, 1, 0
        %v437 = vsel %vm415, 1, 0
        %438 = vset.pattern.permute.xlu0 0
        %439 = vperm.xlu0 %438, %v434
        %v440 = vpop.permute.xlu0 %439
        %441 = vset.pattern.permute.xlu0 0
        %442 = vperm.xlu0 %441, %v435
        %v443 = vpop.permute.xlu0 %442
        %444 = vset.pattern.permute.xlu0 0
        %445 = vperm.xlu0 %444, %v436
        %v446 = vpop.permute.xlu0 %445
        %447 = vset.pattern.permute.xlu0 0
        %448 = vperm.xlu0 %447, %v437
        %v449 = vpop.permute.xlu0 %448
        %vm450 = vcmp.eq.s32.totalorder %v440, 1
        %vm451 = vcmp.eq.s32.totalorder %v443, 1
        %vm452 = vcmp.eq.s32.totalorder %v446, 1
        %vm453 = vcmp.eq.s32.totalorder %v449, 1
        %v454 = vsel %vm450, %v377, -1e+09
        %v455 = vsel %vm451, %v379, -1e+09
        %v456 = vsel %vm452, %v403, -1e+09
        %v457 = vsel %vm453, %v405, -1e+09
        %v458 = vsel %vm426, 1, 0
        %v459 = vsel %vm427, 1, 0
        %vm460 = vcmp.eq.s32.totalorder %v458, 1
        %vm461 = vcmp.eq.s32.totalorder %v459, 1
        %v462 = vsel %vm460, %v454, -1e+09
        %v463 = vsel %vm460, %v455, -1e+09
        %v464 = vsel %vm461, %v456, -1e+09
        %v465 = vsel %vm461, %v457, -1e+09
        %vm466 = vcmask 130048
        %v467 = vsel %vm466, %v462, -inf
        %v468 = vsel %vm466, %v463, -inf
        %v469 = vmax.f32 %v467, %v468
        %v470 = vrot.slane %v469, 4
        %v471 = vmax.f32 %v469, %v470
        %v472 = vrot.slane %v471, 2
        %v473 = vmax.f32 %v471, %v472
        %v474 = vrot.slane %v473, 1
        %v475 = vmax.f32 %v473, %v474
        %v476 = vsel %vm466, %v464, -inf
        %v477 = vsel %vm466, %v465, -inf
        %v478 = vmax.f32 %v476, %v477
        %v479 = vrot.slane %v478, 4
        %v480 = vmax.f32 %v478, %v479
        %v481 = vrot.slane %v480, 2
        %v482 = vmax.f32 %v480, %v481
        %v483 = vrot.slane %v482, 1
        %v484 = vmax.f32 %v482, %v483
        %v485 = vsub.f32 %v462, %v475
        %v486 = vsub.f32 %v463, %v475
        %v487 = vsub.f32 %v464, %v484
        %v488 = vsub.f32 %v465, %v484
        %v489 = vmul.f32 %v485, 1.442695
        %v490 = vpow.pop %v489
        %v491 = vmul.f32 %v486, 1.442695
        %v492 = vpow.pop %v491
        %v493 = vmul.f32 %v487, 1.442695
        %v494 = vpow.pop %v493
        %v495 = vmul.f32 %v488, 1.442695
        %v496 = vpow.pop %v495
        %497 = vmax.xlane.f32.xlu0 %v467
        %v498 = vpop.xlane.xlu0 %497
        %499 = vmax.xlane.f32.xlu0 %v468
        %v500 = vpop.xlane.xlu0 %499
        %501 = vmax.xlane.f32.xlu0 %v476
        %v502 = vpop.xlane.xlu0 %501
        %503 = vmax.xlane.f32.xlu0 %v477
        %v504 = vpop.xlane.xlu0 %503
        %v505 = vsub.f32 %v462, %v498
        %v506 = vsub.f32 %v463, %v500
        %v507 = vsub.f32 %v464, %v502
        %v508 = vsub.f32 %v465, %v504
        %v509 = vmul.f32 %v505, 1.442695
        %v510 = vpow.pop %v509
        %v511 = vmul.f32 %v506, 1.442695
        %v512 = vpow.pop %v511
        %v513 = vmul.f32 %v507, 1.442695
        %v514 = vpow.pop %v513
        %v515 = vmul.f32 %v508, 1.442695
        %v516 = vpow.pop %v515
        %517 = vxpose.xlu0.b32.start [1/16] %v490, 128
        %518 = vxpose.xlu0.b32.cont [2/16] %v492, 128
        %519 = vxpose.xlu0.b32.cont [3/16] 0.0, 128
        %520 = vxpose.xlu0.b32.cont [4/16] 0.0, 128
        %521 = vxpose.xlu0.b32.cont [5/16] 0.0, 128
        %522 = vxpose.xlu0.b32.cont [6/16] 0.0, 128
        %523 = vxpose.xlu0.b32.cont [7/16] 0.0, 128
        %524 = vxpose.xlu0.b32.cont [8/16] 0.0, 128
        %525 = vxpose.xlu0.b32.cont [9/16] 0.0, 128
        %526 = vxpose.xlu0.b32.cont [10/16] 0.0, 128
        %527 = vxpose.xlu0.b32.cont [11/16] 0.0, 128
        %528 = vxpose.xlu0.b32.cont [12/16] 0.0, 128
        %529 = vxpose.xlu0.b32.cont [13/16] 0.0, 128
        %530 = vxpose.xlu0.b32.cont [14/16] 0.0, 128
        %531 = vxpose.xlu0.b32.cont [15/16] 0.0, 128
        %532 = vxpose.xlu0.b32.end [16/16] 0.0, 128
        %v533 = vpop.trf.xlu0
        %v534 = vpop.trf.xlu0
        %v535 = vpop.trf.xlu0
        %v536 = vpop.trf.xlu0
        %v537 = vpop.trf.xlu0
        %v538 = vpop.trf.xlu0
        %v539 = vpop.trf.xlu0
        %v540 = vpop.trf.xlu0
        %v541 = vpop.trf.xlu0
        %v542 = vpop.trf.xlu0
        %v543 = vpop.trf.xlu0
        %v544 = vpop.trf.xlu0
        %v545 = vpop.trf.xlu0
        %v546 = vpop.trf.xlu0
        %v547 = vpop.trf.xlu0
        %v548 = vpop.trf.xlu0
        %v550 = vsel %vm466, %v533, 0
        %v553 = vsel %vm466, %v534, 0
        %555 = vmatpush.msra.mxu0 0.0
        %556 = vmatpush.msra.mxu0 0.0
        %557 = vmatpush.msra.mxu0 0.0
        %558 = vmatpush.msra.mxu0 0.0
        %559 = vmatpush.msra.mxu0 0.0
        %560 = vmatpush.msra.mxu0 0.0
        %561 = vmatpush.msra.mxu0 0.0
        %562 = vmatpush.msra.mxu0 0.0
        %563 = vmatpush.msra.mxu0 0.0
        %564 = vmatpush.msra.mxu0 0.0
        %565 = vmatpush.msra.mxu0 0.0
        %566 = vmatpush.msra.mxu0 0.0
        %567 = vmatpush.msra.mxu0 0.0
        %568 = vmatpush.msra.mxu0 0.0
        %569 = vmatpush.msra.mxu0 1.0
        %570 = vmatpush.msra.mxu0 1.0
        %571 = vmatmul.f32.gmra.mxu0 %v550
        %v572 = vpop.f32.mrf.mxu0
        %v573 = vadd.f32 0.0, %v572
        %574 = vmatmul.f32.gmra.mxu0 %v553
        %v575 = vpop.f32.mrf.mxu0
        %v576 = vadd.f32 0.0, %v575
        %577 = vdwg.mxu0
        %578 = vxpose.xlu0.b32.start [1/16] %v494, 128
        %579 = vxpose.xlu0.b32.cont [2/16] %v496, 128
        %580 = vxpose.xlu0.b32.cont [3/16] 0.0, 128
        %581 = vxpose.xlu0.b32.cont [4/16] 0.0, 128
        %582 = vxpose.xlu0.b32.cont [5/16] 0.0, 128
        %583 = vxpose.xlu0.b32.cont [6/16] 0.0, 128
        %584 = vxpose.xlu0.b32.cont [7/16] 0.0, 128
        %585 = vxpose.xlu0.b32.cont [8/16] 0.0, 128
        %586 = vxpose.xlu0.b32.cont [9/16] 0.0, 128
        %587 = vxpose.xlu0.b32.cont [10/16] 0.0, 128
        %588 = vxpose.xlu0.b32.cont [11/16] 0.0, 128
        %589 = vxpose.xlu0.b32.cont [12/16] 0.0, 128
        %590 = vxpose.xlu0.b32.cont [13/16] 0.0, 128
        %591 = vxpose.xlu0.b32.cont [14/16] 0.0, 128
        %592 = vxpose.xlu0.b32.cont [15/16] 0.0, 128
        %593 = vxpose.xlu0.b32.end [16/16] 0.0, 128
        %v594 = vpop.trf.xlu0
        %v595 = vpop.trf.xlu0
        %v596 = vpop.trf.xlu0
        %v597 = vpop.trf.xlu0
        %v598 = vpop.trf.xlu0
        %v599 = vpop.trf.xlu0
        %v600 = vpop.trf.xlu0
        %v601 = vpop.trf.xlu0
        %v602 = vpop.trf.xlu0
        %v603 = vpop.trf.xlu0
        %v604 = vpop.trf.xlu0
        %v605 = vpop.trf.xlu0
        %v606 = vpop.trf.xlu0
        %v607 = vpop.trf.xlu0
        %v608 = vpop.trf.xlu0
        %v609 = vpop.trf.xlu0
        %v611 = vsel %vm466, %v594, 0
        %v614 = vsel %vm466, %v595, 0
        %616 = vmatpush.msra.mxu0 0.0
        %617 = vmatpush.msra.mxu0 0.0
        %618 = vmatpush.msra.mxu0 0.0
        %619 = vmatpush.msra.mxu0 0.0
        %620 = vmatpush.msra.mxu0 0.0
        %621 = vmatpush.msra.mxu0 0.0
        %622 = vmatpush.msra.mxu0 0.0
        %623 = vmatpush.msra.mxu0 0.0
        %624 = vmatpush.msra.mxu0 0.0
        %625 = vmatpush.msra.mxu0 0.0
        %626 = vmatpush.msra.mxu0 0.0
        %627 = vmatpush.msra.mxu0 0.0
        %628 = vmatpush.msra.mxu0 0.0
        %629 = vmatpush.msra.mxu0 0.0
        %630 = vmatpush.msra.mxu0 1.0
        %631 = vmatpush.msra.mxu0 1.0
        %632 = vmatmul.f32.gmra.mxu0 %v611
        %v633 = vpop.f32.mrf.mxu0
        %v634 = vadd.f32 0.0, %v633
        %635 = vmatmul.f32.gmra.mxu0 %v614
        %v636 = vpop.f32.mrf.mxu0
        %v637 = vadd.f32 0.0, %v636
        %638 = vdwg.mxu0
        %v640 = vsel %vm466, %v510, 0
        %v643 = vsel %vm466, %v512, 0
        %645 = vmatpush.msra.mxu0 0.0
        %646 = vmatpush.msra.mxu0 0.0
        %647 = vmatpush.msra.mxu0 0.0
        %648 = vmatpush.msra.mxu0 0.0
        %649 = vmatpush.msra.mxu0 0.0
        %650 = vmatpush.msra.mxu0 0.0
        %651 = vmatpush.msra.mxu0 0.0
        %652 = vmatpush.msra.mxu0 0.0
        %653 = vmatpush.msra.mxu0 0.0
        %654 = vmatpush.msra.mxu0 0.0
        %655 = vmatpush.msra.mxu0 0.0
        %656 = vmatpush.msra.mxu0 0.0
        %657 = vmatpush.msra.mxu0 0.0
        %658 = vmatpush.msra.mxu0 0.0
        %659 = vmatpush.msra.mxu0 1.0
        %660 = vmatpush.msra.mxu0 1.0
        %661 = vmatmul.f32.gmra.mxu0 %v640
        %v662 = vpop.f32.mrf.mxu0
        %v663 = vadd.f32 0.0, %v662
        %664 = vmatmul.f32.gmra.mxu0 %v643
        %v665 = vpop.f32.mrf.mxu0
        %v666 = vadd.f32 0.0, %v665
        %667 = vdwg.mxu0
        %v669 = vsel %vm466, %v514, 0
        %v672 = vsel %vm466, %v516, 0
        %674 = vmatpush.msra.mxu0 0.0
        %675 = vmatpush.msra.mxu0 0.0
        %676 = vmatpush.msra.mxu0 0.0
        %677 = vmatpush.msra.mxu0 0.0
        %678 = vmatpush.msra.mxu0 0.0
        %679 = vmatpush.msra.mxu0 0.0
        %680 = vmatpush.msra.mxu0 0.0
        %681 = vmatpush.msra.mxu0 0.0
        %682 = vmatpush.msra.mxu0 0.0
        %683 = vmatpush.msra.mxu0 0.0
        %684 = vmatpush.msra.mxu0 0.0
        %685 = vmatpush.msra.mxu0 0.0
        %686 = vmatpush.msra.mxu0 0.0
        %687 = vmatpush.msra.mxu0 0.0
        %688 = vmatpush.msra.mxu0 1.0
        %689 = vmatpush.msra.mxu0 1.0
        %690 = vmatmul.f32.gmra.mxu0 %v669
        %v691 = vpop.f32.mrf.mxu0
        %v692 = vadd.f32 0.0, %v691
        %693 = vmatmul.f32.gmra.mxu0 %v672
        %v694 = vpop.f32.mrf.mxu0
        %v695 = vadd.f32 0.0, %v694
        %696 = vdwg.mxu0
        %vm697 = vcmp.gt.s32.totalorder %v345, 1
        %v698 = vsel %vm697, %v345, 1
        %vm699 = vcmp.gt.s32.totalorder %v346, 1
        %v700 = vsel %vm699, %v346, 1
        %v701 = vcvt.s32.f32 %v698
        %v702 = vcvt.s32.f32 %v700
        %v703 = vrcp.pop %v701
        %v704 = vmul.f32 %v701, %v703
        %v705 = vsub.f32 1.0, %v704
        %v706 = vmul.f32 %v703, %v705
        %v707 = vadd.f32 %v703, %v706
        %vm708 = vweird.f32 %v701
        %vm709 = vweird.f32 %v703
        %vm710 = vmor %vm708, %vm709
        %v711 = vsel %vm710, %v703, %v707
        %v712 = vand.u32 2147483647, %v701
        %vm713 = vcmp.eq.f32.partialorder %v712, 8.507059e+37
        %v714 = vand.u32 %v701, 2147483648
        %v715 = vor.u32 1.1754944e-38, %v714
        %v716 = vsel %vm713, %v715, %v711
        %v717 = vmul.f32 1.0, %v716
        %v718 = vrcp.pop %v702
        %v719 = vmul.f32 %v702, %v718
        %v720 = vsub.f32 1.0, %v719
        %v721 = vmul.f32 %v718, %v720
        %v722 = vadd.f32 %v718, %v721
        %vm723 = vweird.f32 %v702
        %vm724 = vweird.f32 %v718
        %vm725 = vmor %vm723, %vm724
        %v726 = vsel %vm725, %v718, %v722
        %v727 = vand.u32 2147483647, %v702
        %vm728 = vcmp.eq.f32.partialorder %v727, 8.507059e+37
        %v729 = vand.u32 %v702, 2147483648
        %v730 = vor.u32 1.1754944e-38, %v729
        %v731 = vsel %vm728, %v730, %v726
        %v732 = vmul.f32 1.0, %v731
        %vm733 = vcmp.gt.s32.totalorder %v343, 1
        %v734 = vsel %vm733, %v343, 1
        %vm735 = vcmp.gt.s32.totalorder %v344, 1
        %v736 = vsel %vm735, %v344, 1
        %v737 = vcvt.s32.f32 %v734
        %v738 = vcvt.s32.f32 %v736
        %v739 = vrcp.pop %v737
        %v740 = vmul.f32 %v737, %v739
        %v741 = vsub.f32 1.0, %v740
        %v742 = vmul.f32 %v739, %v741
        %v743 = vadd.f32 %v739, %v742
        %vm744 = vweird.f32 %v737
        %vm745 = vweird.f32 %v739
        %vm746 = vmor %vm744, %vm745
        %v747 = vsel %vm746, %v739, %v743
        %v748 = vand.u32 2147483647, %v737
        %vm749 = vcmp.eq.f32.partialorder %v748, 8.507059e+37
        %v750 = vand.u32 %v737, 2147483648
        %v751 = vor.u32 1.1754944e-38, %v750
        %v752 = vsel %vm749, %v751, %v747
        %v753 = vmul.f32 1.0, %v752
        %v754 = vrcp.pop %v738
        %v755 = vmul.f32 %v738, %v754
        %v756 = vsub.f32 1.0, %v755
        %v757 = vmul.f32 %v754, %v756
        %v758 = vadd.f32 %v754, %v757
        %vm759 = vweird.f32 %v738
        %vm760 = vweird.f32 %v754
        %vm761 = vmor %vm759, %vm760
        %v762 = vsel %vm761, %v754, %v758
        %v763 = vand.u32 2147483647, %v738
        %vm764 = vcmp.eq.f32.partialorder %v763, 8.507059e+37
        %v765 = vand.u32 %v738, 2147483648
        %v766 = vor.u32 1.1754944e-38, %v765
        %v767 = vsel %vm764, %v766, %v762
        %v768 = vmul.f32 1.0, %v767
        %v769 = vsel %vm430, 1, 0
        %v770 = vsel %vm431, 1, 0
        %v771 = vsel %vm432, 1, 0
        %v772 = vsel %vm433, 1, 0
        %v773 = vcvt.s32.f32 %v769
        %v774 = vcvt.s32.f32 %v770
        %v775 = vcvt.s32.f32 %v771
        %v776 = vcvt.s32.f32 %v772
        %v779 = vperm.slane %v717, 0
        %v780 = vperm.slane %v732, 0
        %v783 = vrcp.pop %v573
        %v784 = vmul.f32 %v573, %v783
        %v785 = vsub.f32 1.0, %v784
        %v786 = vmul.f32 %v783, %v785
        %v787 = vadd.f32 %v783, %v786
        %vm788 = vweird.f32 %v573
        %vm789 = vweird.f32 %v783
        %vm790 = vmor %vm788, %vm789
        %v791 = vsel %vm790, %v783, %v787
        %v792 = vand.u32 2147483647, %v573
        %vm793 = vcmp.eq.f32.partialorder %v792, 8.507059e+37
        %v794 = vand.u32 %v573, 2147483648
        %v795 = vor.u32 1.1754944e-38, %v794
        %v796 = vsel %vm793, %v795, %v791
        %v797 = vmul.f32 %v779, %v796
        %v798 = vrcp.pop %v576
        %v799 = vmul.f32 %v576, %v798
        %v800 = vsub.f32 1.0, %v799
        %v801 = vmul.f32 %v798, %v800
        %v802 = vadd.f32 %v798, %v801
        %vm803 = vweird.f32 %v576
        %vm804 = vweird.f32 %v798
        %vm805 = vmor %vm803, %vm804
        %v806 = vsel %vm805, %v798, %v802
        %v807 = vand.u32 2147483647, %v576
        %vm808 = vcmp.eq.f32.partialorder %v807, 8.507059e+37
        %v809 = vand.u32 %v576, 2147483648
        %v810 = vor.u32 1.1754944e-38, %v809
        %v811 = vsel %vm808, %v810, %v806
        %v812 = vmul.f32 %v779, %v811
        %v813 = vrcp.pop %v634
        %v814 = vmul.f32 %v634, %v813
        %v815 = vsub.f32 1.0, %v814
        %v816 = vmul.f32 %v813, %v815
        %v817 = vadd.f32 %v813, %v816
        %vm818 = vweird.f32 %v634
        %vm819 = vweird.f32 %v813
        %vm820 = vmor %vm818, %vm819
        %v821 = vsel %vm820, %v813, %v817
        %v822 = vand.u32 2147483647, %v634
        %vm823 = vcmp.eq.f32.partialorder %v822, 8.507059e+37
        %v824 = vand.u32 %v634, 2147483648
        %v825 = vor.u32 1.1754944e-38, %v824
        %v826 = vsel %vm823, %v825, %v821
        %v827 = vmul.f32 %v780, %v826
        %v828 = vrcp.pop %v637
        %v829 = vmul.f32 %v637, %v828
        %v830 = vsub.f32 1.0, %v829
        %v831 = vmul.f32 %v828, %v830
        %v832 = vadd.f32 %v828, %v831
        %vm833 = vweird.f32 %v637
        %vm834 = vweird.f32 %v828
        %vm835 = vmor %vm833, %vm834
        %v836 = vsel %vm835, %v828, %v832
        %v837 = vand.u32 2147483647, %v637
        %vm838 = vcmp.eq.f32.partialorder %v837, 8.507059e+37
        %v839 = vand.u32 %v637, 2147483648
        %v840 = vor.u32 1.1754944e-38, %v839
        %v841 = vsel %vm838, %v840, %v836
        %v842 = vmul.f32 %v780, %v841
        %v843 = vmul.f32 %v773, %v797
        %v844 = vmul.f32 %v774, %v812
        %v845 = vmul.f32 %v775, %v827
        %v846 = vmul.f32 %v776, %v842
        %v847 = vcvt.s32.f32 %v434
        %v848 = vcvt.s32.f32 %v435
        %v849 = vcvt.s32.f32 %v436
        %v850 = vcvt.s32.f32 %v437
        %v853 = vperm.slane %v753, 0
        %v854 = vperm.slane %v768, 0
        %v857 = vrcp.pop %v663
        %v858 = vmul.f32 %v663, %v857
        %v859 = vsub.f32 1.0, %v858
        %v860 = vmul.f32 %v857, %v859
        %v861 = vadd.f32 %v857, %v860
        %vm862 = vweird.f32 %v663
        %vm863 = vweird.f32 %v857
        %vm864 = vmor %vm862, %vm863
        %v865 = vsel %vm864, %v857, %v861
        %v866 = vand.u32 2147483647, %v663
        %vm867 = vcmp.eq.f32.partialorder %v866, 8.507059e+37
        %v868 = vand.u32 %v663, 2147483648
        %v869 = vor.u32 1.1754944e-38, %v868
        %v870 = vsel %vm867, %v869, %v865
        %v871 = vmul.f32 %v853, %v870
        %v872 = vrcp.pop %v666
        %v873 = vmul.f32 %v666, %v872
        %v874 = vsub.f32 1.0, %v873
        %v875 = vmul.f32 %v872, %v874
        %v876 = vadd.f32 %v872, %v875
        %vm877 = vweird.f32 %v666
        %vm878 = vweird.f32 %v872
        %vm879 = vmor %vm877, %vm878
        %v880 = vsel %vm879, %v872, %v876
        %v881 = vand.u32 2147483647, %v666
        %vm882 = vcmp.eq.f32.partialorder %v881, 8.507059e+37
        %v883 = vand.u32 %v666, 2147483648
        %v884 = vor.u32 1.1754944e-38, %v883
        %v885 = vsel %vm882, %v884, %v880
        %v886 = vmul.f32 %v853, %v885
        %v887 = vrcp.pop %v692
        %v888 = vmul.f32 %v692, %v887
        %v889 = vsub.f32 1.0, %v888
        %v890 = vmul.f32 %v887, %v889
        %v891 = vadd.f32 %v887, %v890
        %vm892 = vweird.f32 %v692
        %vm893 = vweird.f32 %v887
        %vm894 = vmor %vm892, %vm893
        %v895 = vsel %vm894, %v887, %v891
        %v896 = vand.u32 2147483647, %v692
        %vm897 = vcmp.eq.f32.partialorder %v896, 8.507059e+37
        %v898 = vand.u32 %v692, 2147483648
        %v899 = vor.u32 1.1754944e-38, %v898
        %v900 = vsel %vm897, %v899, %v895
        %v901 = vmul.f32 %v854, %v900
        %v902 = vrcp.pop %v695
        %v903 = vmul.f32 %v695, %v902
        %v904 = vsub.f32 1.0, %v903
        %v905 = vmul.f32 %v902, %v904
        %v906 = vadd.f32 %v902, %v905
        %vm907 = vweird.f32 %v695
        %vm908 = vweird.f32 %v902
        %vm909 = vmor %vm907, %vm908
        %v910 = vsel %vm909, %v902, %v906
        %v911 = vand.u32 2147483647, %v695
        %vm912 = vcmp.eq.f32.partialorder %v911, 8.507059e+37
        %v913 = vand.u32 %v695, 2147483648
        %v914 = vor.u32 1.1754944e-38, %v913
        %v915 = vsel %vm912, %v914, %v910
        %v916 = vmul.f32 %v854, %v915
        %v917 = vmul.f32 %v847, %v871
        %v918 = vmul.f32 %v848, %v886
        %v919 = vmul.f32 %v849, %v901
        %v920 = vmul.f32 %v850, %v916
        %v922 = vsel %vm466, %v490, 0
        %v925 = vsel %vm466, %v492, 0
        %927 = vmatpush.msra.mxu0 0.0
        %928 = vmatpush.msra.mxu0 0.0
        %929 = vmatpush.msra.mxu0 0.0
        %930 = vmatpush.msra.mxu0 0.0
        %931 = vmatpush.msra.mxu0 0.0
        %932 = vmatpush.msra.mxu0 0.0
        %933 = vmatpush.msra.mxu0 0.0
        %934 = vmatpush.msra.mxu0 0.0
        %935 = vmatpush.msra.mxu0 0.0
        %936 = vmatpush.msra.mxu0 0.0
        %937 = vmatpush.msra.mxu0 0.0
        %938 = vmatpush.msra.mxu0 0.0
        %939 = vmatpush.msra.mxu0 0.0
        %940 = vmatpush.msra.mxu0 0.0
        %941 = vmatpush.msra.mxu0 %v844
        %942 = vmatpush.msra.mxu0 %v843
        %943 = vmatmul.f32.gmra.mxu0 %v922
        %v944 = vpop.f32.mrf.mxu0
        %v945 = vadd.f32 1.0, %v944
        %946 = vmatmul.f32.gmra.mxu0 %v925
        %v947 = vpop.f32.mrf.mxu0
        %v948 = vadd.f32 1.0, %v947
        %949 = vdwg.mxu0
        %v951 = vsel %vm466, %v494, 0
        %v954 = vsel %vm466, %v496, 0
        %956 = vmatpush.msra.mxu0 0.0
        %957 = vmatpush.msra.mxu0 0.0
        %958 = vmatpush.msra.mxu0 0.0
        %959 = vmatpush.msra.mxu0 0.0
        %960 = vmatpush.msra.mxu0 0.0
        %961 = vmatpush.msra.mxu0 0.0
        %962 = vmatpush.msra.mxu0 0.0
        %963 = vmatpush.msra.mxu0 0.0
        %964 = vmatpush.msra.mxu0 0.0
        %965 = vmatpush.msra.mxu0 0.0
        %966 = vmatpush.msra.mxu0 0.0
        %967 = vmatpush.msra.mxu0 0.0
        %968 = vmatpush.msra.mxu0 0.0
        %969 = vmatpush.msra.mxu0 0.0
        %970 = vmatpush.msra.mxu0 %v846
        %971 = vmatpush.msra.mxu0 %v845
        %972 = vmatmul.f32.gmra.mxu0 %v951
        %v973 = vpop.f32.mrf.mxu0
        %v974 = vadd.f32 1.0, %v973
        %975 = vmatmul.f32.gmra.mxu0 %v954
        %v976 = vpop.f32.mrf.mxu0
        %v977 = vadd.f32 1.0, %v976
        %978 = vdwg.mxu0
        %v979 = vpack.c.bf16 %v945, %v945
        %v980 = vpack.c.bf16 %v948, %v948
        %v981 = vpack.c.bf16 %v974, %v974
        %v982 = vpack.c.bf16 %v977, %v977
        %983 = vxpose.xlu0.b32.start [1/16] %v510, 128
        %984 = vxpose.xlu0.b32.cont [2/16] %v512, 128
        %985 = vxpose.xlu0.b32.cont [3/16] 0.0, 128
        %986 = vxpose.xlu0.b32.cont [4/16] 0.0, 128
        %987 = vxpose.xlu0.b32.cont [5/16] 0.0, 128
        %988 = vxpose.xlu0.b32.cont [6/16] 0.0, 128
        %989 = vxpose.xlu0.b32.cont [7/16] 0.0, 128
        %990 = vxpose.xlu0.b32.cont [8/16] 0.0, 128
        %991 = vxpose.xlu0.b32.cont [9/16] 0.0, 128
        %992 = vxpose.xlu0.b32.cont [10/16] 0.0, 128
        %993 = vxpose.xlu0.b32.cont [11/16] 0.0, 128
        %994 = vxpose.xlu0.b32.cont [12/16] 0.0, 128
        %995 = vxpose.xlu0.b32.cont [13/16] 0.0, 128
        %996 = vxpose.xlu0.b32.cont [14/16] 0.0, 128
        %997 = vxpose.xlu0.b32.cont [15/16] 0.0, 128
        %998 = vxpose.xlu0.b32.end [16/16] 0.0, 128
        %v999 = vpop.trf.xlu0
        %v1000 = vpop.trf.xlu0
        %v1001 = vpop.trf.xlu0
        %v1002 = vpop.trf.xlu0
        %v1003 = vpop.trf.xlu0
        %v1004 = vpop.trf.xlu0
        %v1005 = vpop.trf.xlu0
        %v1006 = vpop.trf.xlu0
        %v1007 = vpop.trf.xlu0
        %v1008 = vpop.trf.xlu0
        %v1009 = vpop.trf.xlu0
        %v1010 = vpop.trf.xlu0
        %v1011 = vpop.trf.xlu0
        %v1012 = vpop.trf.xlu0
        %v1013 = vpop.trf.xlu0
        %v1014 = vpop.trf.xlu0
        %v1016 = vsel %vm466, %v999, 0
        %v1019 = vsel %vm466, %v1000, 0
        %1021 = vmatpush.msra.mxu0 0.0
        %1022 = vmatpush.msra.mxu0 0.0
        %1023 = vmatpush.msra.mxu0 0.0
        %1024 = vmatpush.msra.mxu0 0.0
        %1025 = vmatpush.msra.mxu0 0.0
        %1026 = vmatpush.msra.mxu0 0.0
        %1027 = vmatpush.msra.mxu0 0.0
        %1028 = vmatpush.msra.mxu0 0.0
        %1029 = vmatpush.msra.mxu0 0.0
        %1030 = vmatpush.msra.mxu0 0.0
        %1031 = vmatpush.msra.mxu0 0.0
        %1032 = vmatpush.msra.mxu0 0.0
        %1033 = vmatpush.msra.mxu0 0.0
        %1034 = vmatpush.msra.mxu0 0.0
        %1035 = vmatpush.msra.mxu0 %v918
        %1036 = vmatpush.msra.mxu0 %v917
        %1037 = vmatmul.f32.gmra.mxu0 %v1016
        %v1038 = vpop.f32.mrf.mxu0
        %v1039 = vadd.f32 1.0, %v1038
        %1040 = vmatmul.f32.gmra.mxu0 %v1019
        %v1041 = vpop.f32.mrf.mxu0
        %v1042 = vadd.f32 1.0, %v1041
        %1043 = vdwg.mxu0
        %1044 = vxpose.xlu0.b32.start [1/16] %v514, 128
        %1045 = vxpose.xlu0.b32.cont [2/16] %v516, 128
        %1046 = vxpose.xlu0.b32.cont [3/16] 0.0, 128
        %1047 = vxpose.xlu0.b32.cont [4/16] 0.0, 128
        %1048 = vxpose.xlu0.b32.cont [5/16] 0.0, 128
        %1049 = vxpose.xlu0.b32.cont [6/16] 0.0, 128
        %1050 = vxpose.xlu0.b32.cont [7/16] 0.0, 128
        %1051 = vxpose.xlu0.b32.cont [8/16] 0.0, 128
        %1052 = vxpose.xlu0.b32.cont [9/16] 0.0, 128
        %1053 = vxpose.xlu0.b32.cont [10/16] 0.0, 128
        %1054 = vxpose.xlu0.b32.cont [11/16] 0.0, 128
        %1055 = vxpose.xlu0.b32.cont [12/16] 0.0, 128
        %1056 = vxpose.xlu0.b32.cont [13/16] 0.0, 128
        %1057 = vxpose.xlu0.b32.cont [14/16] 0.0, 128
        %1058 = vxpose.xlu0.b32.cont [15/16] 0.0, 128
        %1059 = vxpose.xlu0.b32.end [16/16] 0.0, 128
        %v1060 = vpop.trf.xlu0
        %v1061 = vpop.trf.xlu0
        %v1062 = vpop.trf.xlu0
        %v1063 = vpop.trf.xlu0
        %v1064 = vpop.trf.xlu0
        %v1065 = vpop.trf.xlu0
        %v1066 = vpop.trf.xlu0
        %v1067 = vpop.trf.xlu0
        %v1068 = vpop.trf.xlu0
        %v1069 = vpop.trf.xlu0
        %v1070 = vpop.trf.xlu0
        %v1071 = vpop.trf.xlu0
        %v1072 = vpop.trf.xlu0
        %v1073 = vpop.trf.xlu0
        %v1074 = vpop.trf.xlu0
        %v1075 = vpop.trf.xlu0
        %v1077 = vsel %vm466, %v1060, 0
        %v1080 = vsel %vm466, %v1061, 0
        %1082 = vmatpush.msra.mxu0 0.0
        %1083 = vmatpush.msra.mxu0 0.0
        %1084 = vmatpush.msra.mxu0 0.0
        %1085 = vmatpush.msra.mxu0 0.0
        %1086 = vmatpush.msra.mxu0 0.0
        %1087 = vmatpush.msra.mxu0 0.0
        %1088 = vmatpush.msra.mxu0 0.0
        %1089 = vmatpush.msra.mxu0 0.0
        %1090 = vmatpush.msra.mxu0 0.0
        %1091 = vmatpush.msra.mxu0 0.0
        %1092 = vmatpush.msra.mxu0 0.0
        %1093 = vmatpush.msra.mxu0 0.0
        %1094 = vmatpush.msra.mxu0 0.0
        %1095 = vmatpush.msra.mxu0 0.0
        %1096 = vmatpush.msra.mxu0 %v920
        %1097 = vmatpush.msra.mxu0 %v919
        %1098 = vmatmul.f32.gmra.mxu0 %v1077
        %v1099 = vpop.f32.mrf.mxu0
        %v1100 = vadd.f32 1.0, %v1099
        %1101 = vmatmul.f32.gmra.mxu0 %v1080
        %v1102 = vpop.f32.mrf.mxu0
        %v1103 = vadd.f32 1.0, %v1102
        %1104 = vdwg.mxu0
        %v1105 = vpack.c.bf16 %v1039, %v1039
        %v1106 = vpack.c.bf16 %v1042, %v1042
        %v1107 = vpack.c.bf16 %v1100, %v1100
        %v1108 = vpack.c.bf16 %v1103, %v1103
        %1110 = vset.pattern.permute.xlu0 0
        %1111 = vperm.xlu0 %1110, %v979
        %v1112 = vpop.permute.xlu0 %1111
        %v1115 = vunpack.c.l.s4 839922192
        %v1116 = vunpack.c.0.s8 %v1115
        %v1117 = vperm.slane %v1112, %v1116
        %1119 = vset.pattern.permute.xlu0 0
        %1120 = vperm.xlu0 %1119, %v980
        %v1121 = vpop.permute.xlu0 %1120
        %v1124 = vunpack.c.l.s4 839922192
        %v1125 = vunpack.c.0.s8 %v1124
        %v1126 = vperm.slane %v1121, %v1125
        %1128 = vset.pattern.permute.xlu0 0
        %1129 = vperm.xlu0 %1128, %v981
        %v1130 = vpop.permute.xlu0 %1129
        %v1133 = vunpack.c.l.s4 839922192
        %v1134 = vunpack.c.0.s8 %v1133
        %v1135 = vperm.slane %v1130, %v1134
        %1137 = vset.pattern.permute.xlu0 0
        %1138 = vperm.xlu0 %1137, %v982
        %v1139 = vpop.permute.xlu0 %1138
        %v1142 = vunpack.c.l.s4 839922192
        %v1143 = vunpack.c.0.s8 %v1142
        %v1144 = vperm.slane %v1139, %v1143
        %v1145 = vunpack.c.l.bf16 %v347
        %v1146 = vunpack.c.l.bf16 %v348
        %v1147 = vunpack.c.l.bf16 %v349
        %v1148 = vunpack.c.l.bf16 %v350
        %v1149 = vunpack.c.l.bf16 %v1117
        %v1150 = vunpack.c.l.bf16 %v1126
        %v1151 = vunpack.c.l.bf16 %v1135
        %v1152 = vunpack.c.l.bf16 %v1144
        %v1153 = vmul.f32 %v1145, %v1149
        %v1154 = vmul.f32 %v1146, %v1150
        %v1155 = vmul.f32 %v1147, %v1151
        %v1156 = vmul.f32 %v1148, %v1152
        %v1157 = vpack.c.bf16 %v1153, %v1153
        %v1158 = vpack.c.bf16 %v1154, %v1154
        %v1159 = vpack.c.bf16 %v1155, %v1155
        %v1160 = vpack.c.bf16 %v1156, %v1156
        %1161 = vst [vmem:[%s320] sm:$0xf] %v1157
        %1162 = vst [vmem:[%s320 + $0x4] sm:$0xf] %v1158
        %1163 = vst [vmem:[%s320 + $0x8] sm:$0xf] %v1159
        %1164 = vst [vmem:[%s320 + $0xc] sm:$0xf] %v1160
        %1166 = vset.pattern.permute.xlu0 0
        %1167 = vperm.xlu0 %1166, %v1105
        %v1168 = vpop.permute.xlu0 %1167
        %v1171 = vunpack.c.l.s4 839922192
        %v1172 = vunpack.c.0.s8 %v1171
        %v1173 = vperm.slane %v1168, %v1172
        %1175 = vset.pattern.permute.xlu0 0
        %1176 = vperm.xlu0 %1175, %v1106
        %v1177 = vpop.permute.xlu0 %1176
        %v1180 = vunpack.c.l.s4 839922192
        %v1181 = vunpack.c.0.s8 %v1180
        %v1182 = vperm.slane %v1177, %v1181
        %1184 = vset.pattern.permute.xlu0 0
        %1185 = vperm.xlu0 %1184, %v1107
        %v1186 = vpop.permute.xlu0 %1185
        %v1189 = vunpack.c.l.s4 839922192
        %v1190 = vunpack.c.0.s8 %v1189
        %v1191 = vperm.slane %v1186, %v1190
        %1193 = vset.pattern.permute.xlu0 0
        %1194 = vperm.xlu0 %1193, %v1108
        %v1195 = vpop.permute.xlu0 %1194
        %v1198 = vunpack.c.l.s4 839922192
        %v1199 = vunpack.c.0.s8 %v1198
        %v1200 = vperm.slane %v1195, %v1199
        %v1201 = vunpack.c.l.bf16 %v351
        %v1202 = vunpack.c.l.bf16 %v352
        %v1203 = vunpack.c.l.bf16 %v353
        %v1204 = vunpack.c.l.bf16 %v354
        %v1205 = vunpack.c.l.bf16 %v1173
        %v1206 = vunpack.c.l.bf16 %v1182
        %v1207 = vunpack.c.l.bf16 %v1191
        %v1208 = vunpack.c.l.bf16 %v1200
        %v1209 = vmul.f32 %v1201, %v1205
        %v1210 = vmul.f32 %v1202, %v1206
        %v1211 = vmul.f32 %v1203, %v1207
        %v1212 = vmul.f32 %v1204, %v1208
        %v1213 = vpack.c.bf16 %v1209, %v1209
        %v1214 = vpack.c.bf16 %v1210, %v1210
        %v1215 = vpack.c.bf16 %v1211, %v1211
        %v1216 = vpack.c.bf16 %v1212, %v1212
        %1217 = vst [vmem:[%s327] sm:$0xf] %v1213
        %1218 = vst [vmem:[%s327 + $0x4] sm:$0xf] %v1214
        %1219 = vst [vmem:[%s327 + $0x8] sm:$0xf] %v1215
        %1220 = vst [vmem:[%s327 + $0xc] sm:$0xf] %v1216
        %s1221 = sand.u32 %s141, 1
        %s1222 = scalar_lea.sflag [#allocation4], %s1221
        %s1223 = sand.u32 %s141, 1
        %s1224 = smul.addr %s1223, 16
        %s1225 = scalar_lea.vmem [#allocation7], %s1224
        %s1226 = sand.u32 %s167, 1
        %s1227 = scalar_lea.sflag [#allocation9], %s1226
        %s1228 = sand.u32 %s167, 1
        %s1229 = smul.addr %s1228, 16
        %s1230 = scalar_lea.vmem [#allocation8], %s1229
        // Predicated region
        $region45: #{tpu_custom_call.1} parent=35 // pred_check
          %p1231 = pneg %p151
        $region46: #{tpu_custom_call.1} parent=35 // pred_check_branch
          %1233 = sbr.rel (%p1231) target = $region48
        $region47: #{tpu_custom_call.1} parent=35 // pred_region
          %s1234 = smul.u32 2, %s29
          %1236 = vsyncadd %s1222, 0
          %s1237 = smul.addr %s1234, 2
          %s1238 = smul.addr %s1237, 4
          %s1239 = scalar_lea.hbm %s4, %s1238
          %s1240 = sshll.u32 %s1225, 4
          %s1241 = int_to_ptr.vmem [resolvable:$true] %s1240
          %s1242 = sshll.u32 %s1239, 4
          %s1243 = int_to_ptr.hbm [resolvable:$true] %s1242
          %1248 = dma.vmem_to_hbm [thread:$0]  %s1241, 256, %s1243, %s1222, 64, 64, 4
        $region48: #{tpu_custom_call.1} parent=35 // pred_fallthru
          _
        // Predicated region
        $region49: #{tpu_custom_call.1} parent=35 // pred_check
          %p1249 = pneg %p177
        $region50: #{tpu_custom_call.1} parent=35 // pred_check_branch
          %1251 = sbr.rel (%p1249) target = $region52
        $region51: #{tpu_custom_call.1} parent=35 // pred_region
          %s1252 = smul.u32 2, %s29
          %1254 = vsyncadd %s1227, 0
          %s1255 = smul.addr %s1252, 2
          %s1256 = smul.addr %s1255, 4
          %s1257 = scalar_lea.hbm %s5, %s1256
          %s1258 = sshll.u32 %s1230, 4
          %s1259 = int_to_ptr.vmem [resolvable:$true] %s1258
          %s1260 = sshll.u32 %s1257, 4
          %s1261 = int_to_ptr.hbm [resolvable:$true] %s1260
          %1266 = dma.vmem_to_hbm [thread:$0]  %s1259, 256, %s1261, %s1227, 64, 64, 4
        $region52: #{tpu_custom_call.1} parent=35 // pred_fallthru
          _
      $region36: #{tpu_custom_call.1} parent=5 // pred_fallthru
        _
      %p1267 = scmp.le.s32.totalorder 2, %s24
      // Predicated region
      $region53: #{tpu_custom_call.1} parent=5 // pred_check
        %p1268 = pneg %p1267
      $region54: #{tpu_custom_call.1} parent=5 // pred_check_branch
        %1270 = sbr.rel (%p1268) target = $region56
      $region55: #{tpu_custom_call.1} parent=5 // pred_region
        %s1271 = ssub.s32 %s24, 2
        // Predicated region
        $region57: #{tpu_custom_call.1} parent=55 // pred_check
          %p1272 = pneg %p157
        $region58: #{tpu_custom_call.1} parent=55 // pred_check_branch
          %1274 = sbr.rel (%p1272) target = $region60
        $region59: #{tpu_custom_call.1} parent=55 // pred_region
          %s1275 = sand.u32 %s142, 1
          %s1276 = scalar_lea.sflag [#allocation4], %s1275
          %s1277 = sand.u32 %s142, 1
          %s1278 = smul.addr %s1277, 16
          %s1279 = scalar_lea.vmem [#allocation7], %s1278
          %1281 = dma.done %s1276, 256
        $region60: #{tpu_custom_call.1} parent=55 // pred_fallthru
          _
        // Predicated region
        $region61: #{tpu_custom_call.1} parent=55 // pred_check
          %p1282 = pneg %p183
        $region62: #{tpu_custom_call.1} parent=55 // pred_check_branch
          %1284 = sbr.rel (%p1282) target = $region64
        $region63: #{tpu_custom_call.1} parent=55 // pred_region
          %s1285 = sand.u32 %s168, 1
          %s1286 = scalar_lea.sflag [#allocation9], %s1285
          %s1287 = sand.u32 %s168, 1
          %s1288 = smul.addr %s1287, 16
          %s1289 = scalar_lea.vmem [#allocation8], %s1288
          %1291 = dma.done %s1286, 256
        $region64: #{tpu_custom_call.1} parent=55 // pred_fallthru
          _
      $region56: #{tpu_custom_call.1} parent=5 // pred_fallthru
        _
    $region6: #{tpu_custom_call.1} parent=1 // loop_footer
      %s28 = sadd.s32 1, %s24
    $region7: #{tpu_custom_call.1} parent=1 // loop_footer_branch
      %23 = sbr.rel target = $region3
    $region8: #{tpu_custom_call.1} parent=1 // loop_exit
      _
    %1292 = vsyncpa [#allocation3], 1
    %s1293 = scalar_lea.sflag [#allocation3], 1
    %1294 = vsyncpa %s1293, 1
    %1295 = vsyncpa [#allocation6], 1
    %s1296 = scalar_lea.sflag [#allocation6], 1
    %1297 = vsyncpa %s1296, 1
    %1298 = vsyncpa [#allocation4], 1
    %s1299 = scalar_lea.sflag [#allocation4], 1
    %1300 = vsyncpa %s1299, 1
    %1301 = vsyncpa [#allocation9], 1
    %s1302 = scalar_lea.sflag [#allocation9], 1
    %1303 = vsyncpa %s1302, 1

</llo_original>
